<compile_context>
chip_gen: v6e
topology: v6e:2x2x1
jax: 0.10.0
libtpu: 0.0.40
codegen_flags: <defaults>
</compile_context>

<pallas_src>
import jax
import jax.numpy as jnp
from jax import lax
from jax.experimental import pallas as pl
from jax.experimental.pallas import tpu as pltpu


def _orthogonal_scaled_kernel(x_ref, wt_ref, c_ref, b_ref, o_ref):
    # x_ref:  (BLOCK_M, in_dim)    tile of flattened-batch rows
    # wt_ref: (in_dim, out_dim)    weight pre-transposed to the natural (K, N) MXU feed
    # c_ref:  (1, out_dim)         scale row (scalar broadcast or neuron-wise), f32
    # b_ref:  (1, out_dim)         bias row (zeros if bias=False), f32
    # o_ref:  (BLOCK_M, out_dim)   lane-dense output slab
    y = lax.dot_general(
        x_ref[...], wt_ref[...],
        dimension_numbers=(((1,), (0,)), ((), ())),
        preferred_element_type=jnp.float32,
        # NOTE: default matmul precision; f32 inputs are decomposed on the MXU and
        # match the HIGHEST-precision reference well within 1e-4 at these K.
    )
    o_ref[...] = (y * c_ref[...] + b_ref[...]).astype(o_ref.dtype)


def _round_up(v, k):
    return ((v + k - 1) // k) * k


def _pick_block_m(m, requested):
    """Multiple-of-8 row tile, clamped so the grid keeps >= 2 parallel points."""
    tm = max(8, min(int(requested), m))
    if m > 8:
        # Keep at least two grid points so dimension_semantics=("parallel",) can
        # shard the M axis across v7x's two TensorCores when M is modest.
        tm = min(tm, _round_up(pl.cdiv(m, 2), 8))
    return _round_up(tm, 8)


def orthogonal_scaled(x, weight, c=None, b=None, *, block_m=4096, out_dtype=None):
    """
    x:      (..., in_dim)            float32 (or bfloat16)
    weight: (out_dim, in_dim)        orthogonal weight (nn.Linear layout)
    c:      None | scalar | (out_dim,)   scaling / neuron-wise scaling
    b:      None | (out_dim,)            bias
    block_m: rows per grid step (tuned; 4096 fits default scoped VMEM on v5e/v6e/v7x)
    out_dtype: output dtype (defaults to x.dtype; bf16 halves output HBM traffic)
    returns (..., out_dim)
    """
    in_dim = x.shape[-1]
    out_dim = weight.shape[0]
    assert weight.shape[1] == in_dim
    out_dtype = x.dtype if out_dtype is None else out_dtype

    lead = x.shape[:-1]
    m = 1
    for d in lead:
        m *= int(d)
    x2 = x.reshape(m, in_dim)

    # One-time, tiny wrapper-side prep (constant per call, not per grid step):
    #   * weight transposed to (in_dim, out_dim): dense lanes + canonical MXU feed
    #   * scale / bias normalized to (1, out_dim) f32 rows so every module config
    #     (bias / scaling / scaling_neuron_wise) is the same single fused kernel.
    w_t = jnp.asarray(weight, dtype=x.dtype).T
    if c is None:
        c_row = jnp.ones((1, out_dim), dtype=jnp.float32)
    else:
        c_row = jnp.broadcast_to(
            jnp.asarray(c, dtype=jnp.float32).reshape(-1), (out_dim,)
        ).reshape(1, out_dim)
    if b is None:
        b_row = jnp.zeros((1, out_dim), dtype=jnp.float32)
    else:
        b_row = jnp.asarray(b, dtype=jnp.float32).reshape(1, out_dim)

    tm = _pick_block_m(m, block_m)
    # Ragged tail handled by Pallas edge blocks: OOB output rows are not written
    # back, and each row's result depends only on its own input row. No pad/slice.
    grid_m = pl.cdiv(m, tm)

    # Scoped-VMEM budget: double-buffered x/out tiles (lane-padded to 128) plus the
    # resident weight and the tiny scale/bias rows, with headroom.
    in_bytes = jnp.dtype(x.dtype).itemsize
    out_bytes = jnp.dtype(out_dtype).itemsize
    est = (
        2 * tm * _round_up(in_dim, 128) * in_bytes          # x tiles (double-buffered)
        + 2 * tm * _round_up(out_dim, 128) * out_bytes      # out tiles
        + 2 * _round_up(in_dim, 8) * _round_up(out_dim, 128) * in_bytes   # weight
        + 4 * 8 * _round_up(out_dim, 128) * 4               # scale + bias rows
    )
    vmem_limit = int(min(max(est + (2 << 20), 16 << 20), 64 << 20))

    out = pl.pallas_call(
        _orthogonal_scaled_kernel,
        out_shape=jax.ShapeDtypeStruct((m, out_dim), out_dtype),
        grid_spec=pltpu.PrefetchScalarGridSpec(
            num_scalar_prefetch=0,
            grid=(grid_m,),
            in_specs=[
                pl.BlockSpec((tm, in_dim), lambda i: (i, 0)),
                pl.BlockSpec((in_dim, out_dim), lambda i: (0, 0)),  # weight: resident
                pl.BlockSpec((1, out_dim), lambda i: (0, 0)),       # scale row
                pl.BlockSpec((1, out_dim), lambda i: (0, 0)),       # bias row
            ],
            out_specs=pl.BlockSpec((tm, out_dim), lambda i: (i, 0)),
        ),
        compiler_params=pltpu.CompilerParams(
            dimension_semantics=("parallel",),
            vmem_limit_bytes=vmem_limit,
        ),
    )(x2, w_t, c_row, b_row)

    return out.reshape(*lead, out_dim)


def orthogonal_scaled_ref(x, weight, c=None, b=None):
    # Pure-JAX reference mirroring the PyTorch forward exactly.
    y = jnp.einsum("...i,oi->...o", x, weight, precision=lax.Precision.HIGHEST)
    if c is not None:
        y = y * c
    if b is not None:
        y = y + b
    return y


if __name__ == "__main__":
    # Small shapes consistent with an "orthogonal linear decoder":
    #   latent (in_dim) -> neurons (out_dim), applied over (time, trials).
    TIME = 8
    TRIALS = 32          # flattened M = 256 -> block_m clamps to 128, 2 parallel grid points
    IN_DIM = 16
    OUT_DIM = 128        # lane-dense output (multiple of 128)

    key = jax.random.PRNGKey(0)
    kx, kw, kb = jax.random.split(key, 3)

    x = jax.random.normal(kx, (TIME, TRIALS, IN_DIM), dtype=jnp.float32)

    # Deterministic orthogonal weight with orthonormal columns (nn.Linear layout (out, in)).
    # TODO(synk): PyTorch builds this weight via the matrix_exp orthogonal parametrization;
    # that is parameter construction (not part of forward), so QR is used here instead.
    a = jax.random.normal(kw, (OUT_DIM, IN_DIM), dtype=jnp.float32)
    weight, _ = jnp.linalg.qr(a)                      # (OUT_DIM, IN_DIM), W^T W = I

    c = jnp.float32(1.3)                              # scaling=True (scalar c)
    b = (jax.random.uniform(kb, (OUT_DIM,), dtype=jnp.float32) * 2.0 - 1.0) / jnp.sqrt(
        jnp.float32(IN_DIM)
    )                                                 # bias=True init, as in the module

    out = orthogonal_scaled(x, weight, c, b)
    out = jax.block_until_ready(out)

    ref = orthogonal_scaled_ref(x, weight, c, b)
    assert out.shape == (TIME, TRIALS, OUT_DIM)
    assert jnp.allclose(out, ref, atol=1e-4, rtol=1e-4)

    # Also exercise the ragged-M / no-scale / no-bias path (edge-block handling).
    x_ragged = jax.random.normal(kx, (5, 3, IN_DIM), dtype=jnp.float32)   # M = 15
    out_r = jax.block_until_ready(orthogonal_scaled(x_ragged, weight, None, None))
    ref_r = orthogonal_scaled_ref(x_ragged, weight, None, None)
    assert out_r.shape == (5, 3, OUT_DIM)
    assert jnp.allclose(out_r, ref_r, atol=1e-4, rtol=1e-4)

    print("KERNEL_OK")
</pallas_src>

<mosaic_0001>
module attributes {stable_mosaic.version = 11 : i64} {
  func.func @_orthogonal_scaled_kernel(%arg0: i32, %arg1: memref<128x16xf32, #tpu.memory_space<vmem>>, %arg2: memref<16x128xf32, #tpu.memory_space<vmem>>, %arg3: memref<1x128xf32, #tpu.memory_space<vmem>>, %arg4: memref<1x128xf32, #tpu.memory_space<vmem>>, %arg5: memref<128x128xf32, #tpu.memory_space<vmem>>) attributes {dimension_semantics = [#tpu.dimension_semantics<parallel>], iteration_bounds = array<i64: 2>, scalar_prefetch = 0 : i64, scratch_operands = 0 : i64, tpu.core_type = #tpu.core_type<tc>, window_params = [{transform_indices = @transform_0, window_bounds = array<i64: 128, 16>}, {pipeline_mode = #tpu.pipeline_mode<synchronous>, transform_indices = @transform_1, window_bounds = array<i64: 16, 128>}, {pipeline_mode = #tpu.pipeline_mode<synchronous>, transform_indices = @transform_2, window_bounds = array<i64: 1, 128>}, {pipeline_mode = #tpu.pipeline_mode<synchronous>, transform_indices = @transform_3, window_bounds = array<i64: 1, 128>}, {transform_indices = @transform_4, window_bounds = array<i64: 128, 128>}]} {
    %c0 = arith.constant 0 : index
    %c0_0 = arith.constant 0 : index
    %0 = vector.load %arg1[%c0, %c0_0] : memref<128x16xf32, #tpu.memory_space<vmem>>, vector<128x16xf32>
    %c0_1 = arith.constant 0 : index
    %c0_2 = arith.constant 0 : index
    %1 = vector.load %arg2[%c0_1, %c0_2] : memref<16x128xf32, #tpu.memory_space<vmem>>, vector<16x128xf32>
    %cst = arith.constant dense<0.000000e+00> : vector<128x128xf32>
    %2 = tpu.matmul %0, %1, %cst {dimension_numbers = #tpu.dot_dimension_numbers<[1], [0], [0], [1], [0, 0, 1, 1], [], []>} : vector<128x16xf32>, vector<16x128xf32>, vector<128x128xf32> -> vector<128x128xf32>
    %c0_3 = arith.constant 0 : index
    %c0_4 = arith.constant 0 : index
    %3 = vector.load %arg3[%c0_3, %c0_4] : memref<1x128xf32, #tpu.memory_space<vmem>>, vector<1x128xf32>
    %4 = vector.broadcast %3 : vector<1x128xf32> to vector<128x128xf32>
    %5 = arith.mulf %2, %4 : vector<128x128xf32>
    %c0_5 = arith.constant 0 : index
    %c0_6 = arith.constant 0 : index
    %6 = vector.load %arg4[%c0_5, %c0_6] : memref<1x128xf32, #tpu.memory_space<vmem>>, vector<1x128xf32>
    %7 = vector.broadcast %6 : vector<1x128xf32> to vector<128x128xf32>
    %8 = arith.addf %5, %7 : vector<128x128xf32>
    %c0_7 = arith.constant 0 : index
    %c0_8 = arith.constant 0 : index
    %9 = vector.load %arg5[%c0_7, %c0_8] : memref<128x128xf32, #tpu.memory_space<vmem>>, vector<128x128xf32>
    tpu.vector_store %arg5[%c0_7, %c0_8], %8 {strides = array<i32>} : memref<128x128xf32, #tpu.memory_space<vmem>>, vector<128x128xf32>,
    return
  }
  func.func @transform_0(%arg0: i32) -> (i32, i32) {
    %c0_i32 = arith.constant 0 : i32
    %c0_i32_0 = arith.constant 0 : i32
    return %arg0, %c0_i32 : i32, i32
  }
  func.func @transform_1(%arg0: i32) -> (i32, i32) {
    %c0_i32 = arith.constant 0 : i32
    %c0_i32_0 = arith.constant 0 : i32
    %c0_i32_1 = arith.constant 0 : i32
    return %c0_i32, %c0_i32_0 : i32, i32
  }
  func.func @transform_2(%arg0: i32) -> (i32, i32) {
    %c0_i32 = arith.constant 0 : i32
    %c0_i32_0 = arith.constant 0 : i32
    %c0_i32_1 = arith.constant 0 : i32
    return %c0_i32, %c0_i32_0 : i32, i32
  }
  func.func @transform_3(%arg0: i32) -> (i32, i32) {
    %c0_i32 = arith.constant 0 : i32
    %c0_i32_0 = arith.constant 0 : i32
    %c0_i32_1 = arith.constant 0 : i32
    return %c0_i32, %c0_i32_0 : i32, i32
  }
  func.func @transform_4(%arg0: i32) -> (i32, i32) {
    %c0_i32 = arith.constant 0 : i32
    %c0_i32_0 = arith.constant 0 : i32
    return %arg0, %c0_i32 : i32, i32
  }
}

</mosaic_0001>

<llo_original>
// kernel: tpu_custom_call.1
$region0: #{tpu_custom_call.1}
  #allocation0 [shape = 'u32[]', space=smem, size = 0x4, offset = 0x4, fixed_abs, tag = 'smem constant byte address 0x4 - core index']
  #allocation1 [shape = 'u32[144,128]{1,0:T(1,128)}', space=vmem, size = 0x12000, scoped, tag = 'internal scratch']
  %s0 = inlined_call_operand.vmem [shape: f32[256,16], index: 0, kind: input, shape index: {}]
  %s1 = inlined_call_operand.vmem [shape: f32[16,128], index: 1, kind: input, shape index: {}]
  %s2 = inlined_call_operand.vmem [shape: f32[1,128], index: 2, kind: input, shape index: {}]
  %s3 = inlined_call_operand.vmem [shape: f32[1,128], index: 3, kind: input, shape index: {}]
  %s4 = inlined_call_operand.hbm [shape: f32[256,128], index: 4, kind: output, shape index: {}]
  %s5 = sld [smem:[#allocation0]]
  $region49: #{tpu_custom_call.1} parent=0
    _
  %s7 = ssub.s32 1, %s5
  %s8 = scalar_select 0, %s7, %s5
  $region1: #{tpu_custom_call.1} parent=0
    #allocation2 [shape = 'u8[131072]{0}', space=vmem, size = 0x20000, scoped, tag = 'output window, operand 0']
    #allocation3 [shape = 's32[2]{0}', space=sflag, size = 0x8, scoped, tag = 'scoped memory for tpu_custom_call.1']
    %9 = vsyncpa [#allocation3], 0
    %s10 = scalar_lea.sflag [#allocation3], 1
    %11 = vsyncpa %s10, 0
    loop: start=0, step=1, limit=4
    $region2: #{tpu_custom_call.1} parent=1 // loop_pre_header
      _
    $region3: #{tpu_custom_call.1} parent=1 // loop_header
      %s13 = sphi 0, %s17
      %p14 = scmp.ge.s32.totalorder %s13, 4
      %s23 = sphi 0, %s25
      %s26 = sphi 0, %s23
      %s27 = sphi 0, %s26
      %s43 = sphi 0, %s27
      %s47 = sphi 0, %s47
      %s49 = sphi 0, %s47
      %s50 = sphi 0, %s49
      %s64 = sphi 0, %s50
      %s68 = sphi 0, %s68
      %s70 = sphi 0, %s68
      %s71 = sphi 0, %s70
      %s85 = sphi 0, %s71
      %s89 = sphi 0, %s89
      %s91 = sphi 0, %s89
      %s92 = sphi 0, %s91
      %s106 = sphi 0, %s92
      %s112 = sphi 0, %s114
      %s115 = sphi 0, %s112
      %s116 = sphi 0, %s115
      %s132 = sphi 0, %s116
    $region4: #{tpu_custom_call.1} parent=1 // loop_header_branch
      %16 = sbr.rel (%p14) target = $region8
    $region5: #{tpu_custom_call.1} parent=1 // loop_body
      %s18 = ssub.s32 %s13, 1
      %s19 = ssub.s32 %s13, 2
      %s20 = sadd.s32 %s13, 1
      %s21 = ssub.s32 %s13, %s20
      %p22 = scmp.eq.s32.totalorder %s21, 0
      %s24 = sadd.s32 %s23, 1
      %s25 = scalar_select %p22, %s23, %s24
      %p28 = pneg %p22
      %p29 = scmp.eq.s32.totalorder %s13, 1
      %p30 = por %p28, %p29
      %p31 = scmp.ne.s32.totalorder %s23, %s26
      %p32 = scmp.eq.s32.totalorder %s13, 0
      %p33 = por %p31, %p32
      %p34 = scmp.ne.s32.totalorder %s23, %s26
      %p35 = scmp.eq.s32.totalorder %s18, 1
      %p36 = por %p34, %p35
      %p37 = scmp.ne.s32.totalorder %s26, %s27
      %p38 = scmp.eq.s32.totalorder %s18, 0
      %p39 = por %p37, %p38
      %p40 = scmp.ne.s32.totalorder %s26, %s27
      %p41 = scmp.eq.s32.totalorder %s19, 1
      %p42 = por %p40, %p41
      %p44 = scmp.ne.s32.totalorder %s27, %s43
      %p45 = scmp.eq.s32.totalorder %s19, 0
      %p46 = por %p44, %p45
      %s48 = sadd.s32 %s47, 1
      %p51 = scmp.eq.s32.totalorder %s13, 1
      %p52 = scmp.ne.s32.totalorder %s47, %s49
      %p53 = scmp.eq.s32.totalorder %s13, 0
      %p54 = por %p52, %p53
      %p55 = scmp.ne.s32.totalorder %s47, %s49
      %p56 = scmp.eq.s32.totalorder %s18, 1
      %p57 = por %p55, %p56
      %p58 = scmp.ne.s32.totalorder %s49, %s50
      %p59 = scmp.eq.s32.totalorder %s18, 0
      %p60 = por %p58, %p59
      %p61 = scmp.ne.s32.totalorder %s49, %s50
      %p62 = scmp.eq.s32.totalorder %s19, 1
      %p63 = por %p61, %p62
      %p65 = scmp.ne.s32.totalorder %s50, %s64
      %p66 = scmp.eq.s32.totalorder %s19, 0
      %p67 = por %p65, %p66
      %s69 = sadd.s32 %s68, 1
      %p72 = scmp.eq.s32.totalorder %s13, 1
      %p73 = scmp.ne.s32.totalorder %s68, %s70
      %p74 = scmp.eq.s32.totalorder %s13, 0
      %p75 = por %p73, %p74
      %p76 = scmp.ne.s32.totalorder %s68, %s70
      %p77 = scmp.eq.s32.totalorder %s18, 1
      %p78 = por %p76, %p77
      %p79 = scmp.ne.s32.totalorder %s70, %s71
      %p80 = scmp.eq.s32.totalorder %s18, 0
      %p81 = por %p79, %p80
      %p82 = scmp.ne.s32.totalorder %s70, %s71
      %p83 = scmp.eq.s32.totalorder %s19, 1
      %p84 = por %p82, %p83
      %p86 = scmp.ne.s32.totalorder %s71, %s85
      %p87 = scmp.eq.s32.totalorder %s19, 0
      %p88 = por %p86, %p87
      %s90 = sadd.s32 %s89, 1
      %p93 = scmp.eq.s32.totalorder %s13, 1
      %p94 = scmp.ne.s32.totalorder %s89, %s91
      %p95 = scmp.eq.s32.totalorder %s13, 0
      %p96 = por %p94, %p95
      %p97 = scmp.ne.s32.totalorder %s89, %s91
      %p98 = scmp.eq.s32.totalorder %s18, 1
      %p99 = por %p97, %p98
      %p100 = scmp.ne.s32.totalorder %s91, %s92
      %p101 = scmp.eq.s32.totalorder %s18, 0
      %p102 = por %p100, %p101
      %p103 = scmp.ne.s32.totalorder %s91, %s92
      %p104 = scmp.eq.s32.totalorder %s19, 1
      %p105 = por %p103, %p104
      %p107 = scmp.ne.s32.totalorder %s92, %s106
      %p108 = scmp.eq.s32.totalorder %s19, 0
      %p109 = por %p107, %p108
      %s110 = ssub.s32 %s13, %s20
      %p111 = scmp.eq.s32.totalorder %s110, 0
      %s113 = sadd.s32 %s112, 1
      %s114 = scalar_select %p111, %s112, %s113
      %p117 = pneg %p111
      %p118 = scmp.eq.s32.totalorder %s13, 1
      %p119 = por %p117, %p118
      %p120 = scmp.ne.s32.totalorder %s112, %s115
      %p121 = scmp.eq.s32.totalorder %s13, 0
      %p122 = por %p120, %p121
      %p123 = scmp.ne.s32.totalorder %s112, %s115
      %p124 = scmp.eq.s32.totalorder %s18, 1
      %p125 = por %p123, %p124
      %p126 = scmp.ne.s32.totalorder %s115, %s116
      %p127 = scmp.eq.s32.totalorder %s18, 0
      %p128 = por %p126, %p127
      %p129 = scmp.ne.s32.totalorder %s115, %s116
      %p130 = scmp.eq.s32.totalorder %s19, 1
      %p131 = por %p129, %p130
      %p133 = scmp.ne.s32.totalorder %s116, %s132
      %p134 = scmp.eq.s32.totalorder %s19, 0
      %p135 = por %p133, %p134
      %p136 = scmp.le.s32.totalorder 1, %s13
      %p137 = scmp.lt.s32.totalorder %s13, 3
      %p138 = pnand %p136, %p137
      %p139 = pneg %p138
      // Predicated region
      $region9: #{tpu_custom_call.1} parent=5 // pred_check
        _
      $region10: #{tpu_custom_call.1} parent=5 // pred_check_branch
        %141 = sbr.rel (%p138) target = $region12
      $region11: #{tpu_custom_call.1} parent=5 // pred_region
        %s142 = ssub.s32 %s13, 1
        // Predicated region
        $region13: #{tpu_custom_call.1} parent=11 // pred_check
          %p143 = pneg %p60
        $region14: #{tpu_custom_call.1} parent=11 // pred_check_branch
          %145 = sbr.rel (%p143) target = $region16
        $region15: #{tpu_custom_call.1} parent=11 // pred_region
          _
        $region16: #{tpu_custom_call.1} parent=11 // pred_fallthru
          _
        // Predicated region
        $region17: #{tpu_custom_call.1} parent=11 // pred_check
          %p146 = pneg %p81
        $region18: #{tpu_custom_call.1} parent=11 // pred_check_branch
          %148 = sbr.rel (%p146) target = $region20
        $region19: #{tpu_custom_call.1} parent=11 // pred_region
          _
        $region20: #{tpu_custom_call.1} parent=11 // pred_fallthru
          _
        // Predicated region
        $region21: #{tpu_custom_call.1} parent=11 // pred_check
          %p149 = pneg %p102
        $region22: #{tpu_custom_call.1} parent=11 // pred_check_branch
          %151 = sbr.rel (%p149) target = $region24
        $region23: #{tpu_custom_call.1} parent=11 // pred_region
          _
        $region24: #{tpu_custom_call.1} parent=11 // pred_fallthru
          _
      $region12: #{tpu_custom_call.1} parent=5 // pred_fallthru
        _
      %p152 = scmp.lt.s32.totalorder %s13, 2
      // Predicated region
      $region25: #{tpu_custom_call.1} parent=5 // pred_check
        %p153 = pneg %p152
      $region26: #{tpu_custom_call.1} parent=5 // pred_check_branch
        %155 = sbr.rel (%p153) target = $region28
      $region27: #{tpu_custom_call.1} parent=5 // pred_region
        // Predicated region
        $region29: #{tpu_custom_call.1} parent=27 // pred_check
          %p156 = pneg %p33
        $region30: #{tpu_custom_call.1} parent=27 // pred_check_branch
          %158 = sbr.rel (%p156) target = $region32
        $region31: #{tpu_custom_call.1} parent=27 // pred_region
          %s159 = smul.u32 16, %s13
          %p160 = scmp.lt.s32.totalorder %s159, 31
          %s161 = scalar_select %p160, %s159, 31
          %s162 = smul.addr %s161, 8
          %s163 = scalar_lea.vmem %s0, %s162
          %s164 = smul.u32 16, %s13
        $region32: #{tpu_custom_call.1} parent=27 // pred_fallthru
          _
      $region28: #{tpu_custom_call.1} parent=5 // pred_fallthru
        _
      %p165 = scmp.le.s32.totalorder 1, %s13
      %p166 = scmp.lt.s32.totalorder %s13, 3
      %p167 = pnand %p165, %p166
      %p168 = pneg %p167
      // Predicated region
      $region33: #{tpu_custom_call.1} parent=5 // pred_check
        _
      $region34: #{tpu_custom_call.1} parent=5 // pred_check_branch
        %170 = sbr.rel (%p167) target = $region36
      $region35: #{tpu_custom_call.1} parent=5 // pred_region
        %s171 = ssub.s32 %s13, 1
        %s172 = smul.u32 16, %s18
        %p173 = scmp.lt.s32.totalorder %s172, 31
        %s174 = scalar_select %p173, %s172, 31
        %s175 = smul.addr %s174, 8
        %s176 = scalar_lea.vmem %s0, %s175
        %p177 = pneg %p39
        %p178 = pneg %p36
        %p179 = pneg %p60
        %p180 = pneg %p57
        %p181 = pneg %p81
        %p182 = pneg %p78
        %p183 = pneg %p102
        %p184 = pneg %p99
        %p185 = pneg %p128
        %p186 = pneg %p125
        %s187 = sand.u32 %s115, 1
        %s188 = scalar_lea.sflag [#allocation3], %s187
        %s189 = sand.u32 %s115, 1
        %s190 = smul.addr %s189, 128
        %s191 = scalar_lea.vmem [#allocation2], %s190
        %s192 = smul.u32 16, %s18
        %p193 = scmp.lt.s32.totalorder %s192, 31
        %s194 = scalar_select %p193, %s192, 31
        %s195 = smul.addr %s194, 8
        %s196 = scalar_lea.vmem %s0, %s195
        %s197 = smul.u32 16, %s18
        %s198 = smul.u32 16, %s18
        %v199 = vld [vmem:[%s196] sm:$0xff]
        %v200 = vld [vmem:[%s196 + $0x8] sm:$0xff]
        %v201 = vld [vmem:[%s196 + $0x10] sm:$0xff]
        %v202 = vld [vmem:[%s196 + $0x18] sm:$0xff]
        %v203 = vld [vmem:[%s196 + $0x20] sm:$0xff]
        %v204 = vld [vmem:[%s196 + $0x28] sm:$0xff]
        %v205 = vld [vmem:[%s196 + $0x30] sm:$0xff]
        %v206 = vld [vmem:[%s196 + $0x38] sm:$0xff]
        %v207 = vld [vmem:[%s196 + $0x40] sm:$0xff]
        %v208 = vld [vmem:[%s196 + $0x48] sm:$0xff]
        %v209 = vld [vmem:[%s196 + $0x50] sm:$0xff]
        %v210 = vld [vmem:[%s196 + $0x58] sm:$0xff]
        %v211 = vld [vmem:[%s196 + $0x60] sm:$0xff]
        %v212 = vld [vmem:[%s196 + $0x68] sm:$0xff]
        %v213 = vld [vmem:[%s196 + $0x70] sm:$0xff]
        %v214 = vld [vmem:[%s196 + $0x78] sm:$0xff]
        %v215 = vld [vmem:[%s1] sm:$0xff]
        %v216 = vld [vmem:[%s1 + $0x8] sm:$0xff]
        %vm217 = vcmask 130048
        %v219 = vsel %vm217, %v199, 0
        %v222 = vsel %vm217, %v200, 0
        %v225 = vsel %vm217, %v201, 0
        %v228 = vsel %vm217, %v202, 0
        %v231 = vsel %vm217, %v203, 0
        %v234 = vsel %vm217, %v204, 0
        %v237 = vsel %vm217, %v205, 0
        %v240 = vsel %vm217, %v206, 0
        %v243 = vsel %vm217, %v207, 0
        %v246 = vsel %vm217, %v208, 0
        %v249 = vsel %vm217, %v209, 0
        %v252 = vsel %vm217, %v210, 0
        %v255 = vsel %vm217, %v211, 0
        %v258 = vsel %vm217, %v212, 0
        %v261 = vsel %vm217, %v213, 0
        %v264 = vsel %vm217, %v214, 0
        %266 = vmatprep.subr.mxu0 0.0
        %267 = vmatpush1.msra.mxu0 0.0
        %268 = vmatprep.subr.mxu0 0.0
        %269 = vmatpush1.msra.mxu0 0.0
        %270 = vmatprep.subr.mxu0 0.0
        %271 = vmatpush1.msra.mxu0 0.0
        %272 = vmatprep.subr.mxu0 0.0
        %273 = vmatpush1.msra.mxu0 0.0
        %274 = vmatprep.subr.mxu0 0.0
        %275 = vmatpush1.msra.mxu0 0.0
        %276 = vmatprep.subr.mxu0 0.0
        %277 = vmatpush1.msra.mxu0 0.0
        %278 = vmatprep.subr.mxu0 0.0
        %279 = vmatpush1.msra.mxu0 0.0
        %280 = vmatprep.subr.mxu0 0.0
        %281 = vmatpush1.msra.mxu0 0.0
        %282 = vmatprep.subr.mxu0 0.0
        %283 = vmatpush1.msra.mxu0 0.0
        %284 = vmatprep.subr.mxu0 0.0
        %285 = vmatpush1.msra.mxu0 0.0
        %286 = vmatprep.subr.mxu0 0.0
        %287 = vmatpush1.msra.mxu0 0.0
        %288 = vmatprep.subr.mxu0 0.0
        %289 = vmatpush1.msra.mxu0 0.0
        %290 = vmatprep.subr.mxu0 0.0
        %291 = vmatpush1.msra.mxu0 0.0
        %292 = vmatprep.subr.mxu0 0.0
        %293 = vmatpush1.msra.mxu0 0.0
        %294 = vmatprep.subr.mxu0 0.0
        %295 = vmatpush1.msra.mxu0 %v216
        %296 = vmatprep.subr.mxu0 0.0
        %297 = vmatpush1.msra.mxu0 %v215
        %298 = vmatprep.subr.mxu0 0.0
        %299 = vmatpush2.msra.mxu0 0.0
        %300 = vmatprep.subr.mxu0 0.0
        %301 = vmatpush2.msra.mxu0 0.0
        %302 = vmatprep.subr.mxu0 0.0
        %303 = vmatpush2.msra.mxu0 0.0
        %304 = vmatprep.subr.mxu0 0.0
        %305 = vmatpush2.msra.mxu0 0.0
        %306 = vmatprep.subr.mxu0 0.0
        %307 = vmatpush2.msra.mxu0 0.0
        %308 = vmatprep.subr.mxu0 0.0
        %309 = vmatpush2.msra.mxu0 0.0
        %310 = vmatprep.subr.mxu0 0.0
        %311 = vmatpush2.msra.mxu0 0.0
        %312 = vmatprep.subr.mxu0 0.0
        %313 = vmatpush2.msra.mxu0 0.0
        %314 = vmatprep.subr.mxu0 0.0
        %315 = vmatpush2.msra.mxu0 0.0
        %316 = vmatprep.subr.mxu0 0.0
        %317 = vmatpush2.msra.mxu0 0.0
        %318 = vmatprep.subr.mxu0 0.0
        %319 = vmatpush2.msra.mxu0 0.0
        %320 = vmatprep.subr.mxu0 0.0
        %321 = vmatpush2.msra.mxu0 0.0
        %322 = vmatprep.subr.mxu0 0.0
        %323 = vmatpush2.msra.mxu0 0.0
        %324 = vmatprep.subr.mxu0 0.0
        %325 = vmatpush2.msra.mxu0 0.0
        %326 = vmatprep.subr.mxu0 0.0
        %327 = vmatpush2.msra.mxu0 0.0
        %328 = vmatprep.subr.mxu0 0.0
        %329 = vmatpush2.msra.mxu0 0.0
        %330 = vmatprep.mubr.f32.mxu0 0.0
        %331 = vmatmul.mubr.f32.gmra.mxu0 %v219
        %v332 = vpop.f32.mrf.mxu0
        %v333 = vadd.f32 0.0, %v332
        %v334 = vpop.f32.mrf.mxu0
        %335 = vmatprep.mubr.f32.mxu0 0.0
        %336 = vmatmul.mubr.f32.gmra.mxu0 %v222
        %v337 = vpop.f32.mrf.mxu0
        %v338 = vadd.f32 0.0, %v337
        %v339 = vpop.f32.mrf.mxu0
        %340 = vmatprep.mubr.f32.mxu0 0.0
        %341 = vmatmul.mubr.f32.gmra.mxu0 %v225
        %v342 = vpop.f32.mrf.mxu0
        %v343 = vadd.f32 0.0, %v342
        %v344 = vpop.f32.mrf.mxu0
        %345 = vmatprep.mubr.f32.mxu0 0.0
        %346 = vmatmul.mubr.f32.gmra.mxu0 %v228
        %v347 = vpop.f32.mrf.mxu0
        %v348 = vadd.f32 0.0, %v347
        %v349 = vpop.f32.mrf.mxu0
        %350 = vmatprep.mubr.f32.mxu0 0.0
        %351 = vmatmul.mubr.f32.gmra.mxu0 %v231
        %v352 = vpop.f32.mrf.mxu0
        %v353 = vadd.f32 0.0, %v352
        %v354 = vpop.f32.mrf.mxu0
        %355 = vmatprep.mubr.f32.mxu0 0.0
        %356 = vmatmul.mubr.f32.gmra.mxu0 %v234
        %v357 = vpop.f32.mrf.mxu0
        %v358 = vadd.f32 0.0, %v357
        %v359 = vpop.f32.mrf.mxu0
        %360 = vmatprep.mubr.f32.mxu0 0.0
        %361 = vmatmul.mubr.f32.gmra.mxu0 %v237
        %v362 = vpop.f32.mrf.mxu0
        %v363 = vadd.f32 0.0, %v362
        %v364 = vpop.f32.mrf.mxu0
        %365 = vmatprep.mubr.f32.mxu0 0.0
        %366 = vmatmul.mubr.f32.gmra.mxu0 %v240
        %v367 = vpop.f32.mrf.mxu0
        %v368 = vadd.f32 0.0, %v367
        %v369 = vpop.f32.mrf.mxu0
        %370 = vmatprep.mubr.f32.mxu0 0.0
        %371 = vmatmul.mubr.f32.gmra.mxu0 %v243
        %v372 = vpop.f32.mrf.mxu0
        %v373 = vadd.f32 0.0, %v372
        %v374 = vpop.f32.mrf.mxu0
        %375 = vmatprep.mubr.f32.mxu0 0.0
        %376 = vmatmul.mubr.f32.gmra.mxu0 %v246
        %v377 = vpop.f32.mrf.mxu0
        %v378 = vadd.f32 0.0, %v377
        %v379 = vpop.f32.mrf.mxu0
        %380 = vmatprep.mubr.f32.mxu0 0.0
        %381 = vmatmul.mubr.f32.gmra.mxu0 %v249
        %v382 = vpop.f32.mrf.mxu0
        %v383 = vadd.f32 0.0, %v382
        %v384 = vpop.f32.mrf.mxu0
        %385 = vmatprep.mubr.f32.mxu0 0.0
        %386 = vmatmul.mubr.f32.gmra.mxu0 %v252
        %v387 = vpop.f32.mrf.mxu0
        %v388 = vadd.f32 0.0, %v387
        %v389 = vpop.f32.mrf.mxu0
        %390 = vmatprep.mubr.f32.mxu0 0.0
        %391 = vmatmul.mubr.f32.gmra.mxu0 %v255
        %v392 = vpop.f32.mrf.mxu0
        %v393 = vadd.f32 0.0, %v392
        %v394 = vpop.f32.mrf.mxu0
        %395 = vmatprep.mubr.f32.mxu0 0.0
        %396 = vmatmul.mubr.f32.gmra.mxu0 %v258
        %v397 = vpop.f32.mrf.mxu0
        %v398 = vadd.f32 0.0, %v397
        %v399 = vpop.f32.mrf.mxu0
        %400 = vmatprep.mubr.f32.mxu0 0.0
        %401 = vmatmul.mubr.f32.gmra.mxu0 %v261
        %v402 = vpop.f32.mrf.mxu0
        %v403 = vadd.f32 0.0, %v402
        %v404 = vpop.f32.mrf.mxu0
        %405 = vmatprep.mubr.f32.mxu0 0.0
        %406 = vmatmul.mubr.f32.gmra.mxu0 %v264
        %v407 = vpop.f32.mrf.mxu0
        %v408 = vadd.f32 0.0, %v407
        %v409 = vpop.f32.mrf.mxu0
        %410 = vdwg.mxu0
        %v411 = vld [vmem:[%s2] sm:$0x1]
        %v413 = vlaneseq
        %v414 = vshrl.u32 %v413, 7
        %v415 = vsub.s32 0, %v414
        %v416 = vrot.slane %v411, %v415
        %v418 = vmul.f32 %v333, %v416
        %v419 = vmul.f32 %v338, %v416
        %v420 = vmul.f32 %v343, %v416
        %v421 = vmul.f32 %v348, %v416
        %v422 = vmul.f32 %v353, %v416
        %v423 = vmul.f32 %v358, %v416
        %v424 = vmul.f32 %v363, %v416
        %v425 = vmul.f32 %v368, %v416
        %v426 = vmul.f32 %v373, %v416
        %v427 = vmul.f32 %v378, %v416
        %v428 = vmul.f32 %v383, %v416
        %v429 = vmul.f32 %v388, %v416
        %v430 = vmul.f32 %v393, %v416
        %v431 = vmul.f32 %v398, %v416
        %v432 = vmul.f32 %v403, %v416
        %v433 = vmul.f32 %v408, %v416
        %v434 = vld [vmem:[%s3] sm:$0x1]
        %v436 = vlaneseq
        %v437 = vshrl.u32 %v436, 7
        %v438 = vsub.s32 0, %v437
        %v439 = vrot.slane %v434, %v438
        %v441 = vadd.f32 %v418, %v439
        %v442 = vadd.f32 %v419, %v439
        %v443 = vadd.f32 %v420, %v439
        %v444 = vadd.f32 %v421, %v439
        %v445 = vadd.f32 %v422, %v439
        %v446 = vadd.f32 %v423, %v439
        %v447 = vadd.f32 %v424, %v439
        %v448 = vadd.f32 %v425, %v439
        %v449 = vadd.f32 %v426, %v439
        %v450 = vadd.f32 %v427, %v439
        %v451 = vadd.f32 %v428, %v439
        %v452 = vadd.f32 %v429, %v439
        %v453 = vadd.f32 %v430, %v439
        %v454 = vadd.f32 %v431, %v439
        %v455 = vadd.f32 %v432, %v439
        %v456 = vadd.f32 %v433, %v439
        %457 = vst [vmem:[%s191] sm:$0xff] %v441
        %458 = vst [vmem:[%s191 + $0x8] sm:$0xff] %v442
        %459 = vst [vmem:[%s191 + $0x10] sm:$0xff] %v443
        %460 = vst [vmem:[%s191 + $0x18] sm:$0xff] %v444
        %461 = vst [vmem:[%s191 + $0x20] sm:$0xff] %v445
        %462 = vst [vmem:[%s191 + $0x28] sm:$0xff] %v446
        %463 = vst [vmem:[%s191 + $0x30] sm:$0xff] %v447
        %464 = vst [vmem:[%s191 + $0x38] sm:$0xff] %v448
        %465 = vst [vmem:[%s191 + $0x40] sm:$0xff] %v449
        %466 = vst [vmem:[%s191 + $0x48] sm:$0xff] %v450
        %467 = vst [vmem:[%s191 + $0x50] sm:$0xff] %v451
        %468 = vst [vmem:[%s191 + $0x58] sm:$0xff] %v452
        %469 = vst [vmem:[%s191 + $0x60] sm:$0xff] %v453
        %470 = vst [vmem:[%s191 + $0x68] sm:$0xff] %v454
        %471 = vst [vmem:[%s191 + $0x70] sm:$0xff] %v455
        %472 = vst [vmem:[%s191 + $0x78] sm:$0xff] %v456
        %s473 = sand.u32 %s115, 1
        %s474 = scalar_lea.sflag [#allocation3], %s473
        %s475 = sand.u32 %s115, 1
        %s476 = smul.addr %s475, 128
        %s477 = scalar_lea.vmem [#allocation2], %s476
        // Predicated region
        $region37: #{tpu_custom_call.1} parent=35 // pred_check
          %p478 = pneg %p125
        $region38: #{tpu_custom_call.1} parent=35 // pred_check_branch
          %480 = sbr.rel (%p478) target = $region40
        $region39: #{tpu_custom_call.1} parent=35 // pred_region
          %s481 = smul.u32 16, %s18
          %s483 = ssub.s32 2048, 2048
          %484 = vsyncadd %s474, %s483
          %s485 = smul.addr %s481, 128
          %s486 = scalar_lea.hbm %s4, %s485
          %s487 = sshll.u32 %s477, 4
          %s488 = int_to_ptr.vmem [resolvable:$true] %s487
          %493 = dma.vmem_to_hbm [thread:$0]  %s488, 2048, %s486, %s474, 128, 128, 8
        $region40: #{tpu_custom_call.1} parent=35 // pred_fallthru
          _
      $region36: #{tpu_custom_call.1} parent=5 // pred_fallthru
        _
      %p494 = scmp.le.s32.totalorder 2, %s13
      // Predicated region
      $region41: #{tpu_custom_call.1} parent=5 // pred_check
        %p495 = pneg %p494
      $region42: #{tpu_custom_call.1} parent=5 // pred_check_branch
        %497 = sbr.rel (%p495) target = $region44
      $region43: #{tpu_custom_call.1} parent=5 // pred_region
        %s498 = ssub.s32 %s13, 2
        // Predicated region
        $region45: #{tpu_custom_call.1} parent=43 // pred_check
          %p499 = pneg %p131
        $region46: #{tpu_custom_call.1} parent=43 // pred_check_branch
          %501 = sbr.rel (%p499) target = $region48
        $region47: #{tpu_custom_call.1} parent=43 // pred_region
          %s502 = sand.u32 %s116, 1
          %s503 = scalar_lea.sflag [#allocation3], %s502
          %s504 = sand.u32 %s116, 1
          %s505 = smul.addr %s504, 128
          %s506 = scalar_lea.vmem [#allocation2], %s505
          %507 = dma.done %s503, 2048
        $region48: #{tpu_custom_call.1} parent=43 // pred_fallthru
          _
      $region44: #{tpu_custom_call.1} parent=5 // pred_fallthru
        _
    $region6: #{tpu_custom_call.1} parent=1 // loop_footer
      %s17 = sadd.s32 1, %s13
    $region7: #{tpu_custom_call.1} parent=1 // loop_footer_branch
      %12 = sbr.rel target = $region3
    $region8: #{tpu_custom_call.1} parent=1 // loop_exit
      _
    %508 = vsyncpa [#allocation3], 1
    %s509 = scalar_lea.sflag [#allocation3], 1
    %510 = vsyncpa %s509, 1

</llo_original>
